<compile_context>
chip_gen: v6e
topology: v6e:2x2x1
jax: 0.10.0
libtpu: 0.0.40
codegen_flags: <defaults>
</compile_context>

<pallas_src>
import functools

import jax
import jax.numpy as jnp
from jax import lax
from jax.experimental import pallas as pl
from jax.experimental.pallas import tpu as pltpu


def _cnn_kernel(x_ref, wconv_ref, bconv_ref, fcw_ref, fcb_ref, out_ref, *,
                kernel_sizes, kernel_num, compute_dtype):
    """Whole forward pass for one batch tile.

    x_ref:     (TB, S, E)
    wconv_ref: (E, sum(ks)*K)   fused conv weights (tap-major per kernel size)
    bconv_ref: (1, n*K)         fused conv biases
    fcw_ref:   (n*K, C)         fc weight, already transposed
    fcb_ref:   (1, C)
    out_ref:   (TB, C)          float32 logits
    """
    TB, S, E = x_ref.shape
    K = kernel_num
    n = len(kernel_sizes)
    rows = TB * S

    # ---- fused conv bank: ONE MXU matmul covers every (kernel_size, tap) ----
    x = x_ref[...].reshape(rows, E).astype(compute_dtype)        # (TB*S, E)
    w = wconv_ref[...].astype(compute_dtype)                     # (E, T*K)
    p = jnp.dot(x, w, preferred_element_type=jnp.float32)        # (TB*S, T*K)

    # Pre-shift the whole tap slab once per tap offset (cheap XLU sublane
    # rotate).  Rows that wrap around land in positions masked below.
    max_ks = max(kernel_sizes)
    shifted = [p] + [pltpu.roll(p, shift=rows - j, axis=0)
                     for j in range(1, max_ks)]

    # Time index within each sequence, for masking the ragged conv tail.
    t_idx = lax.broadcasted_iota(jnp.int32, (TB, S, K), 1).reshape(rows, K)

    bconv = bconv_ref[...]                                       # (1, n*K) f32
    parts = []
    col = 0
    for i, ks in enumerate(kernel_sizes):
        L = S - ks + 1                                           # valid-conv length
        # init accumulator with tap 0 + bias (no zeros-fill, no repeated bcast)
        acc = shifted[0][:, col * K:(col + 1) * K] + bconv[:, i * K:(i + 1) * K]
        for j in range(1, ks):
            acc = acc + shifted[j][:, (col + j) * K:(col + j + 1) * K]
        col += ks
        act = jnp.maximum(acc, 0.0)                              # ReLU
        # mask out-of-window (incl. roll-wrapped) time steps with -inf
        act = jnp.where(t_idx < L, act, -jnp.inf)
        parts.append(act)

    act_all = jnp.concatenate(parts, axis=1)                     # (TB*S, n*K) lane-dense
    feat = jnp.max(act_all.reshape(TB, S, n * K), axis=1)        # max-over-time -> (TB, n*K)
    # TODO(synk): nn.Dropout is a training-time op; inference forward is identity.

    logits = jnp.dot(feat, fcw_ref[...].astype(jnp.float32),
                     preferred_element_type=jnp.float32) + fcb_ref[...]
    out_ref[...] = logits.astype(jnp.float32)


def _fuse_conv_weights(conv_ws, conv_bs):
    """conv_ws[i]: (K, ks_i, E) -> fused (E, sum(ks)*K); conv_bs -> (1, n*K).

    Column layout: for kernel size i, tap j, channel k the column index is
    (sum(ks[:i]) + j) * K + k, matching the kernel's slicing.
    """
    cols = []
    for w in conv_ws:                                   # (K, ks, E)
        K, ks, E = w.shape
        cols.append(jnp.transpose(w, (1, 0, 2)).reshape(ks * K, E))
    wfused = jnp.concatenate(cols, axis=0).T            # (E, sum(ks)*K)
    bfused = jnp.concatenate(conv_bs, axis=0).reshape(1, -1)   # (1, n*K)
    return wfused, bfused


def cnn_forward(x, conv_ws, conv_bs, fc_w, fc_b, *, kernel_sizes, kernel_num,
                class_num, block_b=None, compute_dtype=jnp.float32):
    """x: (B, S, E); conv_ws[i]: (K, ks_i, E); conv_bs[i]: (K,);
       fc_w: (C, len(ks)*K); fc_b: (C,). Returns (B, C) float32 logits.

    compute_dtype=jnp.bfloat16 is recommended on v6e/v7x (MXU-native, f32 acc).
    """
    B, S, E = x.shape
    n = len(kernel_sizes)
    total_taps = sum(kernel_sizes)
    wfused, bfused = _fuse_conv_weights(conv_ws, conv_bs)
    fcw_t = jnp.transpose(fc_w)                         # (n*K, C)
    fcb = fc_b.reshape(1, -1)                           # (1, C)

    if block_b is None:
        # Tiny per-row footprint here; for large S*E re-derive the tile
        # against pltpu.get_tpu_info().vmem_capacity_bytes (v7x has 64 MiB).
        block_b = B if B <= 128 else 128
    grid = (pl.cdiv(B, block_b),)

    kernel = functools.partial(_cnn_kernel,
                               kernel_sizes=tuple(kernel_sizes),
                               kernel_num=kernel_num,
                               compute_dtype=compute_dtype)
    return pl.pallas_call(
        kernel,
        out_shape=jax.ShapeDtypeStruct((B, class_num), jnp.float32),
        grid_spec=pltpu.PrefetchScalarGridSpec(
            num_scalar_prefetch=0,
            grid=grid,
            in_specs=[
                pl.BlockSpec((block_b, S, E), lambda i: (i, 0, 0)),          # x: pipelined over batch
                pl.BlockSpec((E, total_taps * kernel_num), lambda i: (0, 0)),  # fused conv W (resident)
                pl.BlockSpec((1, n * kernel_num), lambda i: (0, 0)),         # fused conv bias
                pl.BlockSpec((n * kernel_num, class_num), lambda i: (0, 0)),  # fc W^T
                pl.BlockSpec((1, class_num), lambda i: (0, 0)),              # fc bias
            ],
            out_specs=pl.BlockSpec((block_b, class_num), lambda i: (i, 0)),
        ),
        compiler_params=pltpu.CompilerParams(
            dimension_semantics=("parallel",)),   # second TC on v7x; no-op on v5e/v6e
    )(x, wfused, bfused, fcw_t, fcb)


def _reference_forward(x, conv_ws, conv_bs, fc_w, fc_b):
    """Pure-JAX reference mirroring the PyTorch forward (eval mode)."""
    feats = []
    for w, b in zip(conv_ws, conv_bs):
        K, ks, E = w.shape
        B, S, _ = x.shape
        L = S - ks + 1
        win = jnp.stack([x[:, j:j + L, :] for j in range(ks)], axis=2)  # (B,L,ks,E)
        conv = jnp.einsum('blje,kje->blk', win, w) + b[None, None, :]
        feats.append(jnp.max(jax.nn.relu(conv), axis=1))
    feat = jnp.concatenate(feats, axis=1)
    return (feat @ fc_w.T + fc_b).astype(jnp.float32)


if __name__ == "__main__":
    # Module hyper-parameters (small, consistent with the forward).
    embed_dim = 16
    class_num = 3
    kernel_num = 4
    kernel_sizes = (3, 4, 5)
    B, S = 2, 16

    key = jax.random.PRNGKey(0)
    keys = jax.random.split(key, 3 + 2 * len(kernel_sizes) + 2)

    x = jax.random.normal(keys[0], (B, S, embed_dim), dtype=jnp.float32)

    conv_ws, conv_bs = [], []
    for i, ks in enumerate(kernel_sizes):
        conv_ws.append(0.1 * jax.random.normal(
            keys[1 + 2 * i], (kernel_num, ks, embed_dim), dtype=jnp.float32))
        conv_bs.append(0.1 * jax.random.normal(
            keys[2 + 2 * i], (kernel_num,), dtype=jnp.float32))

    fc_in = len(kernel_sizes) * kernel_num
    fc_w = 0.1 * jax.random.normal(keys[-3], (class_num, fc_in), dtype=jnp.float32)
    fc_b = 0.1 * jax.random.normal(keys[-2], (class_num,), dtype=jnp.float32)

    # ---- f32 path (exact vs reference) ----
    logits = cnn_forward(x, conv_ws, conv_bs, fc_w, fc_b,
                         kernel_sizes=kernel_sizes, kernel_num=kernel_num,
                         class_num=class_num)
    jax.block_until_ready(logits)
    ref = _reference_forward(x, conv_ws, conv_bs, fc_w, fc_b)
    assert logits.shape == (B, class_num) and logits.dtype == jnp.float32
    assert jnp.allclose(logits, ref, atol=1e-4, rtol=1e-4), "f32 mismatch vs reference"

    # ---- bf16 MXU-input path (v6e/v7x recommendation), f32 accumulation ----
    logits_bf16 = cnn_forward(x, conv_ws, conv_bs, fc_w, fc_b,
                              kernel_sizes=kernel_sizes, kernel_num=kernel_num,
                              class_num=class_num, compute_dtype=jnp.bfloat16)
    jax.block_until_ready(logits_bf16)
    assert jnp.allclose(logits_bf16, ref, atol=1e-1), "bf16 mismatch vs reference"

    # ---- multi-step batch grid (pipelined x, resident weights) ----
    xb = jax.random.normal(keys[-1], (16, S, embed_dim), dtype=jnp.float32)
    logits_b = cnn_forward(xb, conv_ws, conv_bs, fc_w, fc_b,
                           kernel_sizes=kernel_sizes, kernel_num=kernel_num,
                           class_num=class_num, block_b=8)
    jax.block_until_ready(logits_b)
    ref_b = _reference_forward(xb, conv_ws, conv_bs, fc_w, fc_b)
    assert jnp.allclose(logits_b, ref_b, atol=1e-4, rtol=1e-4), "grid mismatch vs reference"

    print("KERNEL_OK")
</pallas_src>

<mosaic_0001>
module attributes {stable_mosaic.version = 11 : i64} {
  func.func @_cnn_kernel(%arg0: i32, %arg1: memref<2x16x16xf32, #tpu.memory_space<vmem>>, %arg2: memref<16x48xf32, #tpu.memory_space<vmem>>, %arg3: memref<1x12xf32, #tpu.memory_space<vmem>>, %arg4: memref<12x3xf32, #tpu.memory_space<vmem>>, %arg5: memref<1x3xf32, #tpu.memory_space<vmem>>, %arg6: memref<2x3xf32, #tpu.memory_space<vmem>>) attributes {dimension_semantics = [#tpu.dimension_semantics<parallel>], iteration_bounds = array<i64: 1>, scalar_prefetch = 0 : i64, scratch_operands = 0 : i64, tpu.core_type = #tpu.core_type<tc>, window_params = [{transform_indices = @transform_0, window_bounds = array<i64: 2, 16, 16>}, {pipeline_mode = #tpu.pipeline_mode<synchronous>, transform_indices = @transform_1, window_bounds = array<i64: 16, 48>}, {pipeline_mode = #tpu.pipeline_mode<synchronous>, transform_indices = @transform_2, window_bounds = array<i64: 1, 12>}, {pipeline_mode = #tpu.pipeline_mode<synchronous>, transform_indices = @transform_3, window_bounds = array<i64: 12, 3>}, {pipeline_mode = #tpu.pipeline_mode<synchronous>, transform_indices = @transform_4, window_bounds = array<i64: 1, 3>}, {transform_indices = @transform_5, window_bounds = array<i64: 2, 3>}]} {
    %c0 = arith.constant 0 : index
    %c0_0 = arith.constant 0 : index
    %c0_1 = arith.constant 0 : index
    %0 = vector.load %arg1[%c0, %c0_0, %c0_1] : memref<2x16x16xf32, #tpu.memory_space<vmem>>, vector<2x16x16xf32>
    %1 = vector.shape_cast %0 : vector<2x16x16xf32> to vector<32x16xf32>
    %c0_2 = arith.constant 0 : index
    %c0_3 = arith.constant 0 : index
    %2 = vector.load %arg2[%c0_2, %c0_3] : memref<16x48xf32, #tpu.memory_space<vmem>>, vector<16x48xf32>
    %cst = arith.constant dense<0.000000e+00> : vector<32x48xf32>
    %3 = tpu.matmul %1, %2, %cst {dimension_numbers = #tpu.dot_dimension_numbers<[1], [0], [0], [1], [0, 0, 1, 1], [], []>} : vector<32x16xf32>, vector<16x48xf32>, vector<32x48xf32> -> vector<32x48xf32>
    %c31_i32 = arith.constant 31 : i32
    %4 = tpu.dynamic_rotate %3 by %c31_i32 dim 0 : vector<32x48xf32>, i32 -> vector<32x48xf32>
    %c30_i32 = arith.constant 30 : i32
    %5 = tpu.dynamic_rotate %3 by %c30_i32 dim 0 : vector<32x48xf32>, i32 -> vector<32x48xf32>
    %c29_i32 = arith.constant 29 : i32
    %6 = tpu.dynamic_rotate %3 by %c29_i32 dim 0 : vector<32x48xf32>, i32 -> vector<32x48xf32>
    %c28_i32 = arith.constant 28 : i32
    %7 = tpu.dynamic_rotate %3 by %c28_i32 dim 0 : vector<32x48xf32>, i32 -> vector<32x48xf32>
    %8 = tpu.iota {dimensions = array<i32: 1>} : vector<2x16x4xi32>
    %9 = vector.shape_cast %8 : vector<2x16x4xi32> to vector<32x4xi32>
    %c0_4 = arith.constant 0 : index
    %c0_5 = arith.constant 0 : index
    %10 = vector.load %arg3[%c0_4, %c0_5] : memref<1x12xf32, #tpu.memory_space<vmem>>, vector<1x12xf32>
    %11 = vector.extract_strided_slice %3 {offsets = [0, 0], sizes = [32, 4], strides = [1, 1]} : vector<32x48xf32> to vector<32x4xf32>
    %12 = vector.extract_strided_slice %10 {offsets = [0, 0], sizes = [1, 4], strides = [1, 1]} : vector<1x12xf32> to vector<1x4xf32>
    %13 = vector.broadcast %12 : vector<1x4xf32> to vector<32x4xf32>
    %14 = arith.addf %11, %13 : vector<32x4xf32>
    %15 = vector.extract_strided_slice %4 {offsets = [0, 4], sizes = [32, 4], strides = [1, 1]} : vector<32x48xf32> to vector<32x4xf32>
    %16 = arith.addf %14, %15 : vector<32x4xf32>
    %17 = vector.extract_strided_slice %5 {offsets = [0, 8], sizes = [32, 4], strides = [1, 1]} : vector<32x48xf32> to vector<32x4xf32>
    %18 = arith.addf %16, %17 : vector<32x4xf32>
    %cst_6 = arith.constant 0.000000e+00 : f32
    %19 = vector.broadcast %cst_6 : f32 to vector<32x4xf32>
    %20 = arith.maximumf %18, %19 : vector<32x4xf32>
    %c14_i32 = arith.constant 14 : i32
    %21 = vector.broadcast %c14_i32 : i32 to vector<32x4xi32>
    %22 = arith.cmpi slt, %9, %21 : vector<32x4xi32>
    %cst_7 = arith.constant 0xFF800000 : f32
    %23 = vector.broadcast %cst_7 : f32 to vector<32x4xf32>
    %24 = arith.select %22, %20, %23 : vector<32x4xi1>, vector<32x4xf32>
    %25 = vector.extract_strided_slice %3 {offsets = [0, 12], sizes = [32, 4], strides = [1, 1]} : vector<32x48xf32> to vector<32x4xf32>
    %26 = vector.extract_strided_slice %10 {offsets = [0, 4], sizes = [1, 4], strides = [1, 1]} : vector<1x12xf32> to vector<1x4xf32>
    %27 = vector.broadcast %26 : vector<1x4xf32> to vector<32x4xf32>
    %28 = arith.addf %25, %27 : vector<32x4xf32>
    %29 = vector.extract_strided_slice %4 {offsets = [0, 16], sizes = [32, 4], strides = [1, 1]} : vector<32x48xf32> to vector<32x4xf32>
    %30 = arith.addf %28, %29 : vector<32x4xf32>
    %31 = vector.extract_strided_slice %5 {offsets = [0, 20], sizes = [32, 4], strides = [1, 1]} : vector<32x48xf32> to vector<32x4xf32>
    %32 = arith.addf %30, %31 : vector<32x4xf32>
    %33 = vector.extract_strided_slice %6 {offsets = [0, 24], sizes = [32, 4], strides = [1, 1]} : vector<32x48xf32> to vector<32x4xf32>
    %34 = arith.addf %32, %33 : vector<32x4xf32>
    %cst_8 = arith.constant 0.000000e+00 : f32
    %35 = vector.broadcast %cst_8 : f32 to vector<32x4xf32>
    %36 = arith.maximumf %34, %35 : vector<32x4xf32>
    %c13_i32 = arith.constant 13 : i32
    %37 = vector.broadcast %c13_i32 : i32 to vector<32x4xi32>
    %38 = arith.cmpi slt, %9, %37 : vector<32x4xi32>
    %cst_9 = arith.constant 0xFF800000 : f32
    %39 = vector.broadcast %cst_9 : f32 to vector<32x4xf32>
    %40 = arith.select %38, %36, %39 : vector<32x4xi1>, vector<32x4xf32>
    %41 = vector.extract_strided_slice %3 {offsets = [0, 28], sizes = [32, 4], strides = [1, 1]} : vector<32x48xf32> to vector<32x4xf32>
    %42 = vector.extract_strided_slice %10 {offsets = [0, 8], sizes = [1, 4], strides = [1, 1]} : vector<1x12xf32> to vector<1x4xf32>
    %43 = vector.broadcast %42 : vector<1x4xf32> to vector<32x4xf32>
    %44 = arith.addf %41, %43 : vector<32x4xf32>
    %45 = vector.extract_strided_slice %4 {offsets = [0, 32], sizes = [32, 4], strides = [1, 1]} : vector<32x48xf32> to vector<32x4xf32>
    %46 = arith.addf %44, %45 : vector<32x4xf32>
    %47 = vector.extract_strided_slice %5 {offsets = [0, 36], sizes = [32, 4], strides = [1, 1]} : vector<32x48xf32> to vector<32x4xf32>
    %48 = arith.addf %46, %47 : vector<32x4xf32>
    %49 = vector.extract_strided_slice %6 {offsets = [0, 40], sizes = [32, 4], strides = [1, 1]} : vector<32x48xf32> to vector<32x4xf32>
    %50 = arith.addf %48, %49 : vector<32x4xf32>
    %51 = vector.extract_strided_slice %7 {offsets = [0, 44], sizes = [32, 4], strides = [1, 1]} : vector<32x48xf32> to vector<32x4xf32>
    %52 = arith.addf %50, %51 : vector<32x4xf32>
    %cst_10 = arith.constant 0.000000e+00 : f32
    %53 = vector.broadcast %cst_10 : f32 to vector<32x4xf32>
    %54 = arith.maximumf %52, %53 : vector<32x4xf32>
    %c12_i32 = arith.constant 12 : i32
    %55 = vector.broadcast %c12_i32 : i32 to vector<32x4xi32>
    %56 = arith.cmpi slt, %9, %55 : vector<32x4xi32>
    %cst_11 = arith.constant 0xFF800000 : f32
    %57 = vector.broadcast %cst_11 : f32 to vector<32x4xf32>
    %58 = arith.select %56, %54, %57 : vector<32x4xi1>, vector<32x4xf32>
    %59 = tpu.concatenate %24, %40, %58 in 1 : vector<32x4xf32>, vector<32x4xf32>, vector<32x4xf32> -> vector<32x12xf32>
    %60 = vector.shape_cast %59 : vector<32x12xf32> to vector<2x16x12xf32>
    %cst_12 = arith.constant dense<0xFF800000> : vector<2x12xf32>
    %61 = vector.multi_reduction <maximumf>, %60, %cst_12 [1] : vector<2x16x12xf32> to vector<2x12xf32>
    %c0_13 = arith.constant 0 : index
    %c0_14 = arith.constant 0 : index
    %62 = vector.load %arg4[%c0_13, %c0_14] : memref<12x3xf32, #tpu.memory_space<vmem>>, vector<12x3xf32>
    %cst_15 = arith.constant dense<0.000000e+00> : vector<2x3xf32>
    %63 = tpu.matmul %61, %62, %cst_15 {dimension_numbers = #tpu.dot_dimension_numbers<[1], [0], [0], [1], [0, 0, 1, 1], [], []>} : vector<2x12xf32>, vector<12x3xf32>, vector<2x3xf32> -> vector<2x3xf32>
    %c0_16 = arith.constant 0 : index
    %c0_17 = arith.constant 0 : index
    %64 = vector.load %arg5[%c0_16, %c0_17] : memref<1x3xf32, #tpu.memory_space<vmem>>, vector<1x3xf32>
    %65 = vector.broadcast %64 : vector<1x3xf32> to vector<2x3xf32>
    %66 = arith.addf %63, %65 : vector<2x3xf32>
    %c0_18 = arith.constant 0 : index
    %c0_19 = arith.constant 0 : index
    %67 = vector.load %arg6[%c0_18, %c0_19] : memref<2x3xf32, #tpu.memory_space<vmem>>, vector<2x3xf32>
    tpu.vector_store %arg6[%c0_18, %c0_19], %66 {strides = array<i32>} : memref<2x3xf32, #tpu.memory_space<vmem>>, vector<2x3xf32>,
    return
  }
  func.func @transform_0(%arg0: i32) -> (i32, i32, i32) {
    %c0_i32 = arith.constant 0 : i32
    %c0_i32_0 = arith.constant 0 : i32
    %c0_i32_1 = arith.constant 0 : i32
    return %arg0, %c0_i32, %c0_i32_0 : i32, i32, i32
  }
  func.func @transform_1(%arg0: i32) -> (i32, i32) {
    %c0_i32 = arith.constant 0 : i32
    %c0_i32_0 = arith.constant 0 : i32
    %c0_i32_1 = arith.constant 0 : i32
    return %c0_i32, %c0_i32_0 : i32, i32
  }
  func.func @transform_2(%arg0: i32) -> (i32, i32) {
    %c0_i32 = arith.constant 0 : i32
    %c0_i32_0 = arith.constant 0 : i32
    %c0_i32_1 = arith.constant 0 : i32
    return %c0_i32, %c0_i32_0 : i32, i32
  }
  func.func @transform_3(%arg0: i32) -> (i32, i32) {
    %c0_i32 = arith.constant 0 : i32
    %c0_i32_0 = arith.constant 0 : i32
    %c0_i32_1 = arith.constant 0 : i32
    return %c0_i32, %c0_i32_0 : i32, i32
  }
  func.func @transform_4(%arg0: i32) -> (i32, i32) {
    %c0_i32 = arith.constant 0 : i32
    %c0_i32_0 = arith.constant 0 : i32
    %c0_i32_1 = arith.constant 0 : i32
    return %c0_i32, %c0_i32_0 : i32, i32
  }
  func.func @transform_5(%arg0: i32) -> (i32, i32) {
    %c0_i32 = arith.constant 0 : i32
    %c0_i32_0 = arith.constant 0 : i32
    return %arg0, %c0_i32 : i32, i32
  }
}

</mosaic_0001>

<llo_original>
// kernel: tpu_custom_call.1
$region0: #{tpu_custom_call.1}
  #allocation0 [shape = 'u32[]', space=smem, size = 0x4, offset = 0x4, fixed_abs, tag = 'smem constant byte address 0x4 - core index']
  #allocation1 [shape = 'u32[144,128]{1,0:T(1,128)}', space=vmem, size = 0x12000, scoped, tag = 'internal scratch']
  %s0 = inlined_call_operand.hbm [shape: f32[2,16,16], index: 0, kind: input, shape index: {}]
  %s1 = inlined_call_operand.vmem [shape: f32[16,48], index: 1, kind: input, shape index: {}]
  %s2 = inlined_call_operand.vmem [shape: f32[1,12], index: 2, kind: input, shape index: {}]
  %s3 = inlined_call_operand.vmem [shape: f32[12,3], index: 3, kind: input, shape index: {}]
  %s4 = inlined_call_operand.vmem [shape: f32[1,3], index: 4, kind: input, shape index: {}]
  %s5 = inlined_call_operand.hbm [shape: f32[2,3], index: 5, kind: output, shape index: {}]
  %s6 = sld [smem:[#allocation0]]
  $region34: #{tpu_custom_call.1} parent=0
    _
  %s8 = ssub.s32 1, %s6
  %s9 = scalar_select 0, %s8, %s6
  $region1: #{tpu_custom_call.1} parent=0
    #allocation2 [shape = 'u8[16384]{0}', space=vmem, size = 0x4000, scoped, tag = 'input window, operand 0, single buffered']
    #allocation3 [shape = 's32[1]{0}', space=sflag, size = 0x4, scoped, tag = 'scoped memory for tpu_custom_call.1']
    #allocation4 [shape = 's32[1]{0}', space=sflag, size = 0x4, scoped, tag = 'scoped memory for tpu_custom_call.1']
    #allocation5 [shape = 'u8[1024]{0}', space=vmem, size = 0x400, scoped, tag = 'output window, operand 0, single buffered']
    %10 = vsyncpa [#allocation3], 0
    %11 = vsyncpa [#allocation4], 0
    // Predicated region
    $region2: #{tpu_custom_call.1} parent=1 // pred_check
      _
    $region3: #{tpu_custom_call.1} parent=1 // pred_check_branch
      %13 = sbr.rel (0) target = $region5
    $region4: #{tpu_custom_call.1} parent=1 // pred_region
      %s15 = ssub.s32 512, 512
      %16 = vsyncadd [#allocation3], %s15
      %s17 = sshll.u32 [#allocation2], 4
      %s18 = int_to_ptr.vmem [resolvable:$true] %s17
      %23 = dma.hbm_to_vmem [thread:$0]  %s0, 512, %s18, [#allocation3], 128, 128, 8
    $region5: #{tpu_custom_call.1} parent=1 // pred_fallthru
      _
    // Predicated region
    $region6: #{tpu_custom_call.1} parent=1 // pred_check
      _
    $region7: #{tpu_custom_call.1} parent=1 // pred_check_branch
      %25 = sbr.rel (0) target = $region9
    $region8: #{tpu_custom_call.1} parent=1 // pred_region
      _
    $region9: #{tpu_custom_call.1} parent=1 // pred_fallthru
      _
    // Predicated region
    $region10: #{tpu_custom_call.1} parent=1 // pred_check
      _
    $region11: #{tpu_custom_call.1} parent=1 // pred_check_branch
      %27 = sbr.rel (0) target = $region13
    $region12: #{tpu_custom_call.1} parent=1 // pred_region
      _
    $region13: #{tpu_custom_call.1} parent=1 // pred_fallthru
      _
    // Predicated region
    $region14: #{tpu_custom_call.1} parent=1 // pred_check
      _
    $region15: #{tpu_custom_call.1} parent=1 // pred_check_branch
      %29 = sbr.rel (0) target = $region17
    $region16: #{tpu_custom_call.1} parent=1 // pred_region
      _
    $region17: #{tpu_custom_call.1} parent=1 // pred_fallthru
      _
    // Predicated region
    $region18: #{tpu_custom_call.1} parent=1 // pred_check
      _
    $region19: #{tpu_custom_call.1} parent=1 // pred_check_branch
      %31 = sbr.rel (0) target = $region21
    $region20: #{tpu_custom_call.1} parent=1 // pred_region
      _
    $region21: #{tpu_custom_call.1} parent=1 // pred_fallthru
      _
    // Predicated region
    $region22: #{tpu_custom_call.1} parent=1 // pred_check
      _
    $region23: #{tpu_custom_call.1} parent=1 // pred_check_branch
      %33 = sbr.rel (0) target = $region25
    $region24: #{tpu_custom_call.1} parent=1 // pred_region
      %34 = dma.done [#allocation3], 512
    $region25: #{tpu_custom_call.1} parent=1 // pred_fallthru
      _
    %v35 = vld [vmem:[#allocation2] sm:$0xff]
    %v36 = vld [vmem:[#allocation2 + $0x8] sm:$0xff]
    %v37 = vld [vmem:[#allocation2 + $0x10] sm:$0xff]
    %v38 = vld [vmem:[#allocation2 + $0x18] sm:$0xff]
    %v39 = vld [vmem:[%s1] sm:$0xff]
    %v40 = vld [vmem:[%s1 + $0x8] sm:$0xff]
    %vm41 = vcmask 130048
    %v43 = vsel %vm41, %v35, 0
    %v46 = vsel %vm41, %v36, 0
    %v49 = vsel %vm41, %v37, 0
    %v52 = vsel %vm41, %v38, 0
    %54 = vmatprep.subr.mxu0 0.0
    %55 = vmatpush1.msra.mxu0 0.0
    %56 = vmatprep.subr.mxu0 0.0
    %57 = vmatpush1.msra.mxu0 0.0
    %58 = vmatprep.subr.mxu0 0.0
    %59 = vmatpush1.msra.mxu0 0.0
    %60 = vmatprep.subr.mxu0 0.0
    %61 = vmatpush1.msra.mxu0 0.0
    %62 = vmatprep.subr.mxu0 0.0
    %63 = vmatpush1.msra.mxu0 0.0
    %64 = vmatprep.subr.mxu0 0.0
    %65 = vmatpush1.msra.mxu0 0.0
    %66 = vmatprep.subr.mxu0 0.0
    %67 = vmatpush1.msra.mxu0 0.0
    %68 = vmatprep.subr.mxu0 0.0
    %69 = vmatpush1.msra.mxu0 0.0
    %70 = vmatprep.subr.mxu0 0.0
    %71 = vmatpush1.msra.mxu0 0.0
    %72 = vmatprep.subr.mxu0 0.0
    %73 = vmatpush1.msra.mxu0 0.0
    %74 = vmatprep.subr.mxu0 0.0
    %75 = vmatpush1.msra.mxu0 0.0
    %76 = vmatprep.subr.mxu0 0.0
    %77 = vmatpush1.msra.mxu0 0.0
    %78 = vmatprep.subr.mxu0 0.0
    %79 = vmatpush1.msra.mxu0 0.0
    %80 = vmatprep.subr.mxu0 0.0
    %81 = vmatpush1.msra.mxu0 0.0
    %82 = vmatprep.subr.mxu0 0.0
    %83 = vmatpush1.msra.mxu0 %v40
    %84 = vmatprep.subr.mxu0 0.0
    %85 = vmatpush1.msra.mxu0 %v39
    %86 = vmatprep.subr.mxu0 0.0
    %87 = vmatpush2.msra.mxu0 0.0
    %88 = vmatprep.subr.mxu0 0.0
    %89 = vmatpush2.msra.mxu0 0.0
    %90 = vmatprep.subr.mxu0 0.0
    %91 = vmatpush2.msra.mxu0 0.0
    %92 = vmatprep.subr.mxu0 0.0
    %93 = vmatpush2.msra.mxu0 0.0
    %94 = vmatprep.subr.mxu0 0.0
    %95 = vmatpush2.msra.mxu0 0.0
    %96 = vmatprep.subr.mxu0 0.0
    %97 = vmatpush2.msra.mxu0 0.0
    %98 = vmatprep.subr.mxu0 0.0
    %99 = vmatpush2.msra.mxu0 0.0
    %100 = vmatprep.subr.mxu0 0.0
    %101 = vmatpush2.msra.mxu0 0.0
    %102 = vmatprep.subr.mxu0 0.0
    %103 = vmatpush2.msra.mxu0 0.0
    %104 = vmatprep.subr.mxu0 0.0
    %105 = vmatpush2.msra.mxu0 0.0
    %106 = vmatprep.subr.mxu0 0.0
    %107 = vmatpush2.msra.mxu0 0.0
    %108 = vmatprep.subr.mxu0 0.0
    %109 = vmatpush2.msra.mxu0 0.0
    %110 = vmatprep.subr.mxu0 0.0
    %111 = vmatpush2.msra.mxu0 0.0
    %112 = vmatprep.subr.mxu0 0.0
    %113 = vmatpush2.msra.mxu0 0.0
    %114 = vmatprep.subr.mxu0 0.0
    %115 = vmatpush2.msra.mxu0 0.0
    %116 = vmatprep.subr.mxu0 0.0
    %117 = vmatpush2.msra.mxu0 0.0
    %118 = vmatprep.mubr.f32.mxu0 0.0
    %119 = vmatmul.mubr.f32.gmra.mxu0 %v43
    %v120 = vpop.f32.mrf.mxu0
    %v121 = vadd.f32 0.0, %v120
    %v122 = vpop.f32.mrf.mxu0
    %123 = vmatprep.mubr.f32.mxu0 0.0
    %124 = vmatmul.mubr.f32.gmra.mxu0 %v46
    %v125 = vpop.f32.mrf.mxu0
    %v126 = vadd.f32 0.0, %v125
    %v127 = vpop.f32.mrf.mxu0
    %128 = vmatprep.mubr.f32.mxu0 0.0
    %129 = vmatmul.mubr.f32.gmra.mxu0 %v49
    %v130 = vpop.f32.mrf.mxu0
    %v131 = vadd.f32 0.0, %v130
    %v132 = vpop.f32.mrf.mxu0
    %133 = vmatprep.mubr.f32.mxu0 0.0
    %134 = vmatmul.mubr.f32.gmra.mxu0 %v52
    %v135 = vpop.f32.mrf.mxu0
    %v136 = vadd.f32 0.0, %v135
    %v137 = vpop.f32.mrf.mxu0
    %138 = vdwg.mxu0
    %v139 = vrot.slane %v121, 1
    %v140 = vrot.slane %v126, 1
    %v141 = vrot.slane %v131, 1
    %v142 = vrot.slane %v136, 1
    %v143 = vlaneseq
    %v144 = vshrl.u32 %v143, 7
    %vm145 = vcmp.lt.s32.totalorder %v144, 7
    %v146 = vsel %vm145, %v141, %v142
    %v147 = vsel %vm145, %v140, %v141
    %v148 = vsel %vm145, %v139, %v140
    %v149 = vsel %vm145, %v142, %v139
    %v150 = vrot.slane %v121, 2
    %v151 = vrot.slane %v126, 2
    %v152 = vrot.slane %v131, 2
    %v153 = vrot.slane %v136, 2
    %vm154 = vcmp.lt.s32.totalorder %v144, 6
    %v155 = vsel %vm154, %v152, %v153
    %v156 = vsel %vm154, %v151, %v152
    %v157 = vsel %vm154, %v150, %v151
    %v158 = vsel %vm154, %v153, %v150
    %v159 = vrot.slane %v121, 3
    %v160 = vrot.slane %v126, 3
    %v161 = vrot.slane %v131, 3
    %v162 = vrot.slane %v136, 3
    %vm163 = vcmp.lt.s32.totalorder %v144, 5
    %v164 = vsel %vm163, %v161, %v162
    %v165 = vsel %vm163, %v160, %v161
    %v166 = vsel %vm163, %v159, %v160
    %v167 = vsel %vm163, %v162, %v159
    %v168 = vrot.slane %v121, 4
    %v169 = vrot.slane %v126, 4
    %v170 = vrot.slane %v131, 4
    %v171 = vrot.slane %v136, 4
    %vm172 = vcmp.lt.s32.totalorder %v144, 4
    %v173 = vsel %vm172, %v170, %v171
    %v174 = vsel %vm172, %v169, %v170
    %v175 = vsel %vm172, %v168, %v169
    %v176 = vsel %vm172, %v171, %v168
    %v177 = vadd.s32 %v144, 8
    %v178 = vld [vmem:[%s2] sm:$0x1]
    %v180 = vlaneseq
    %v181 = vshrl.u32 %v180, 7
    %v182 = vsub.s32 0, %v181
    %v183 = vrot.slane %v178, %v182
    %v185 = vadd.f32 %v121, %v183
    %v186 = vadd.f32 %v126, %v183
    %v187 = vadd.f32 %v131, %v183
    %v188 = vadd.f32 %v136, %v183
    %193 = vrot.lane.b32.xlu0 %v148, 124
    %v194 = vpop.permute.xlu0 %193
    %195 = vrot.lane.b32.xlu0 %v147, 124
    %v196 = vpop.permute.xlu0 %195
    %197 = vrot.lane.b32.xlu0 %v146, 124
    %v198 = vpop.permute.xlu0 %197
    %199 = vrot.lane.b32.xlu0 %v149, 124
    %v200 = vpop.permute.xlu0 %199
    %v205 = vadd.f32 %v185, %v194
    %v206 = vadd.f32 %v186, %v196
    %v207 = vadd.f32 %v187, %v198
    %v208 = vadd.f32 %v188, %v200
    %213 = vrot.lane.b32.xlu0 %v157, 120
    %v214 = vpop.permute.xlu0 %213
    %215 = vrot.lane.b32.xlu0 %v156, 120
    %v216 = vpop.permute.xlu0 %215
    %217 = vrot.lane.b32.xlu0 %v155, 120
    %v218 = vpop.permute.xlu0 %217
    %219 = vrot.lane.b32.xlu0 %v158, 120
    %v220 = vpop.permute.xlu0 %219
    %v225 = vadd.f32 %v205, %v214
    %v226 = vadd.f32 %v206, %v216
    %v227 = vadd.f32 %v207, %v218
    %v228 = vadd.f32 %v208, %v220
    %v229 = vmax.f32 %v225, 0.0
    %v230 = vmax.f32 %v226, 0.0
    %v231 = vmax.f32 %v227, 0.0
    %v232 = vmax.f32 %v228, 0.0
    %vm233 = vcmp.lt.s32.totalorder %v144, 14
    %vm234 = vcmp.lt.s32.totalorder %v177, 14
    %v235 = vsel %vm233, %v229, -inf
    %v236 = vsel %vm234, %v230, -inf
    %v237 = vsel %vm233, %v231, -inf
    %v238 = vsel %vm234, %v232, -inf
    %239 = vrot.lane.b32.xlu0 %v183, 8
    %v240 = vpop.permute.xlu0 %239
    %v242 = vadd.f32 %v121, %v240
    %v243 = vadd.f32 %v126, %v240
    %v244 = vadd.f32 %v131, %v240
    %v245 = vadd.f32 %v136, %v240
    %v246 = vadd.f32 %v242, %v194
    %v247 = vadd.f32 %v243, %v196
    %v248 = vadd.f32 %v244, %v198
    %v249 = vadd.f32 %v245, %v200
    %v250 = vadd.f32 %v246, %v214
    %v251 = vadd.f32 %v247, %v216
    %v252 = vadd.f32 %v248, %v218
    %v253 = vadd.f32 %v249, %v220
    %258 = vrot.lane.b32.xlu0 %v166, 116
    %v259 = vpop.permute.xlu0 %258
    %260 = vrot.lane.b32.xlu0 %v165, 116
    %v261 = vpop.permute.xlu0 %260
    %262 = vrot.lane.b32.xlu0 %v164, 116
    %v263 = vpop.permute.xlu0 %262
    %264 = vrot.lane.b32.xlu0 %v167, 116
    %v265 = vpop.permute.xlu0 %264
    %v270 = vadd.f32 %v250, %v259
    %v271 = vadd.f32 %v251, %v261
    %v272 = vadd.f32 %v252, %v263
    %v273 = vadd.f32 %v253, %v265
    %v274 = vmax.f32 %v270, 0.0
    %v275 = vmax.f32 %v271, 0.0
    %v276 = vmax.f32 %v272, 0.0
    %v277 = vmax.f32 %v273, 0.0
    %vm278 = vcmp.lt.s32.totalorder %v144, 13
    %vm279 = vcmp.lt.s32.totalorder %v177, 13
    %v280 = vsel %vm278, %v274, -inf
    %v281 = vsel %vm279, %v275, -inf
    %v282 = vsel %vm278, %v276, -inf
    %v283 = vsel %vm279, %v277, -inf
    %284 = vrot.lane.b32.xlu0 %v183, 20
    %v285 = vpop.permute.xlu0 %284
    %v287 = vadd.f32 %v121, %v285
    %v288 = vadd.f32 %v126, %v285
    %v289 = vadd.f32 %v131, %v285
    %v290 = vadd.f32 %v136, %v285
    %v291 = vadd.f32 %v287, %v194
    %v292 = vadd.f32 %v288, %v196
    %v293 = vadd.f32 %v289, %v198
    %v294 = vadd.f32 %v290, %v200
    %v295 = vadd.f32 %v291, %v214
    %v296 = vadd.f32 %v292, %v216
    %v297 = vadd.f32 %v293, %v218
    %v298 = vadd.f32 %v294, %v220
    %v299 = vadd.f32 %v295, %v259
    %v300 = vadd.f32 %v296, %v261
    %v301 = vadd.f32 %v297, %v263
    %v302 = vadd.f32 %v298, %v265
    %307 = vrot.lane.b32.xlu0 %v175, 112
    %v308 = vpop.permute.xlu0 %307
    %309 = vrot.lane.b32.xlu0 %v174, 112
    %v310 = vpop.permute.xlu0 %309
    %311 = vrot.lane.b32.xlu0 %v173, 112
    %v312 = vpop.permute.xlu0 %311
    %313 = vrot.lane.b32.xlu0 %v176, 112
    %v314 = vpop.permute.xlu0 %313
    %v319 = vadd.f32 %v299, %v308
    %v320 = vadd.f32 %v300, %v310
    %v321 = vadd.f32 %v301, %v312
    %v322 = vadd.f32 %v302, %v314
    %v323 = vmax.f32 %v319, 0.0
    %v324 = vmax.f32 %v320, 0.0
    %v325 = vmax.f32 %v321, 0.0
    %v326 = vmax.f32 %v322, 0.0
    %vm327 = vcmp.lt.s32.totalorder %v144, 12
    %vm328 = vcmp.lt.s32.totalorder %v177, 12
    %v329 = vsel %vm327, %v323, -inf
    %v330 = vsel %vm328, %v324, -inf
    %v331 = vsel %vm327, %v325, -inf
    %v332 = vsel %vm328, %v326, -inf
    %337 = vrot.lane.b32.xlu0 %v280, 120
    %v338 = vpop.permute.xlu0 %337
    %339 = vrot.lane.b32.xlu0 %v281, 120
    %v340 = vpop.permute.xlu0 %339
    %341 = vrot.lane.b32.xlu0 %v282, 120
    %v342 = vpop.permute.xlu0 %341
    %343 = vrot.lane.b32.xlu0 %v283, 120
    %v344 = vpop.permute.xlu0 %343
    %353 = vrot.lane.b32.xlu0 %v329, 108
    %v354 = vpop.permute.xlu0 %353
    %355 = vrot.lane.b32.xlu0 %v330, 108
    %v356 = vpop.permute.xlu0 %355
    %357 = vrot.lane.b32.xlu0 %v331, 108
    %v358 = vpop.permute.xlu0 %357
    %359 = vrot.lane.b32.xlu0 %v332, 108
    %v360 = vpop.permute.xlu0 %359
    %vm365 = vcmask 31744
    %v366 = vsel %vm365, %v235, %v338
    %v367 = vsel %vm365, %v236, %v340
    %v368 = vsel %vm365, %v237, %v342
    %v369 = vsel %vm365, %v238, %v344
    %vm370 = vcmask 64512
    %v371 = vsel %vm370, %v366, %v354
    %v372 = vsel %vm370, %v367, %v356
    %v373 = vsel %vm370, %v368, %v358
    %v374 = vsel %vm370, %v369, %v360
    %vm375 = vcmask 97280
    %v376 = vsel %vm375, %v371, -inf
    %v377 = vsel %vm375, %v372, -inf
    %v378 = vmax.f32 %v376, %v377
    %v379 = vrot.slane %v378, 4
    %v380 = vmax.f32 %v378, %v379
    %v381 = vrot.slane %v380, 2
    %v382 = vmax.f32 %v380, %v381
    %v383 = vrot.slane %v382, 1
    %v384 = vmax.f32 %v382, %v383
    %v385 = vsel %vm375, %v373, -inf
    %v386 = vsel %vm375, %v374, -inf
    %v387 = vmax.f32 %v385, %v386
    %v388 = vrot.slane %v387, 4
    %v389 = vmax.f32 %v387, %v388
    %v390 = vrot.slane %v389, 2
    %v391 = vmax.f32 %v389, %v390
    %v392 = vrot.slane %v391, 1
    %v393 = vmax.f32 %v391, %v392
    %v394 = vld [vmem:[%s3] sm:$0xff]
    %v395 = vld [vmem:[%s3 + $0x8] sm:$0xf]
    %v396 = vld [vmem:[%s4] sm:$0x1]
    %v398 = vlaneseq
    %v399 = vshrl.u32 %v398, 7
    %v400 = vsub.s32 0, %v399
    %v401 = vrot.slane %v396, %v400
    %vm405 = vcmask 1041409
    %v406 = vsel %vm405, %v393, %v384
    %v407 = vsel %vm375, %v406, 0
    %vm409 = vcmask 1043456
    %v411 = vsel %vm409, %v395, 0
    %413 = vmatprep.subr.mxu0 0.0
    %414 = vmatpush1.msra.mxu0 0.0
    %415 = vmatprep.subr.mxu0 0.0
    %416 = vmatpush1.msra.mxu0 0.0
    %417 = vmatprep.subr.mxu0 0.0
    %418 = vmatpush1.msra.mxu0 0.0
    %419 = vmatprep.subr.mxu0 0.0
    %420 = vmatpush1.msra.mxu0 0.0
    %421 = vmatprep.subr.mxu0 0.0
    %422 = vmatpush1.msra.mxu0 0.0
    %423 = vmatprep.subr.mxu0 0.0
    %424 = vmatpush1.msra.mxu0 0.0
    %425 = vmatprep.subr.mxu0 0.0
    %426 = vmatpush1.msra.mxu0 0.0
    %427 = vmatprep.subr.mxu0 0.0
    %428 = vmatpush1.msra.mxu0 0.0
    %429 = vmatprep.subr.mxu0 0.0
    %430 = vmatpush1.msra.mxu0 0.0
    %431 = vmatprep.subr.mxu0 0.0
    %432 = vmatpush1.msra.mxu0 0.0
    %433 = vmatprep.subr.mxu0 0.0
    %434 = vmatpush1.msra.mxu0 0.0
    %435 = vmatprep.subr.mxu0 0.0
    %436 = vmatpush1.msra.mxu0 0.0
    %437 = vmatprep.subr.mxu0 0.0
    %438 = vmatpush1.msra.mxu0 0.0
    %439 = vmatprep.subr.mxu0 0.0
    %440 = vmatpush1.msra.mxu0 0.0
    %441 = vmatprep.subr.mxu0 0.0
    %442 = vmatpush1.msra.mxu0 %v411
    %443 = vmatprep.subr.mxu0 0.0
    %444 = vmatpush1.msra.mxu0 %v394
    %445 = vmatprep.subr.mxu0 0.0
    %446 = vmatpush2.msra.mxu0 0.0
    %447 = vmatprep.subr.mxu0 0.0
    %448 = vmatpush2.msra.mxu0 0.0
    %449 = vmatprep.subr.mxu0 0.0
    %450 = vmatpush2.msra.mxu0 0.0
    %451 = vmatprep.subr.mxu0 0.0
    %452 = vmatpush2.msra.mxu0 0.0
    %453 = vmatprep.subr.mxu0 0.0
    %454 = vmatpush2.msra.mxu0 0.0
    %455 = vmatprep.subr.mxu0 0.0
    %456 = vmatpush2.msra.mxu0 0.0
    %457 = vmatprep.subr.mxu0 0.0
    %458 = vmatpush2.msra.mxu0 0.0
    %459 = vmatprep.subr.mxu0 0.0
    %460 = vmatpush2.msra.mxu0 0.0
    %461 = vmatprep.subr.mxu0 0.0
    %462 = vmatpush2.msra.mxu0 0.0
    %463 = vmatprep.subr.mxu0 0.0
    %464 = vmatpush2.msra.mxu0 0.0
    %465 = vmatprep.subr.mxu0 0.0
    %466 = vmatpush2.msra.mxu0 0.0
    %467 = vmatprep.subr.mxu0 0.0
    %468 = vmatpush2.msra.mxu0 0.0
    %469 = vmatprep.subr.mxu0 0.0
    %470 = vmatpush2.msra.mxu0 0.0
    %471 = vmatprep.subr.mxu0 0.0
    %472 = vmatpush2.msra.mxu0 0.0
    %473 = vmatprep.subr.mxu0 0.0
    %474 = vmatpush2.msra.mxu0 0.0
    %475 = vmatprep.subr.mxu0 0.0
    %476 = vmatpush2.msra.mxu0 0.0
    %477 = vmatprep.mubr.f32.mxu0 0.0
    %478 = vmatmul.mubr.f32.gmra.mxu0 %v407
    %v479 = vpop.f32.mrf.mxu0
    %v480 = vadd.f32 %v401, %v479
    %v481 = vpop.f32.mrf.mxu0
    %482 = vdwg.mxu0
    %vm483 = vcmask 17408
    %484 = vst.msk [vmem:[#allocation5] sm:$0x3] %vm483, %v480
    // Predicated region
    $region26: #{tpu_custom_call.1} parent=1 // pred_check
      _
    $region27: #{tpu_custom_call.1} parent=1 // pred_check_branch
      %486 = sbr.rel (0) target = $region29
    $region28: #{tpu_custom_call.1} parent=1 // pred_region
      %s488 = ssub.s32 32, 32
      %489 = vsyncadd [#allocation4], %s488
      %s491 = sshll.u32 [#allocation5], 4
      %s492 = int_to_ptr.vmem [resolvable:$true] %s491
      %494 = dma.vmem_to_hbm [thread:$0]  %s492, 32, %s5, [#allocation4]
    $region29: #{tpu_custom_call.1} parent=1 // pred_fallthru
      _
    // Predicated region
    $region30: #{tpu_custom_call.1} parent=1 // pred_check
      _
    $region31: #{tpu_custom_call.1} parent=1 // pred_check_branch
      %496 = sbr.rel (0) target = $region33
    $region32: #{tpu_custom_call.1} parent=1 // pred_region
      %497 = dma.done [#allocation4], 32
    $region33: #{tpu_custom_call.1} parent=1 // pred_fallthru
      _
    %498 = vsyncpa [#allocation3], 1
    %499 = vsyncpa [#allocation4], 1

</llo_original>
